<compile_context>
chip_gen: v6e
topology: v6e:2x2x1
jax: 0.10.0
libtpu: 0.0.40
codegen_flags: <defaults>
</compile_context>

<pallas_src>
import jax
import jax.numpy as jnp
from jax import lax
from jax.experimental import pallas as pl
from jax.experimental.pallas import tpu as pltpu
import numpy as np

EPS = 1e-5


def _make_residual_block_kernel(Cp, XP, shifts, n_valid, eps):
    inv_n = 1.0 / float(n_valid)

    def kernel(xpad_ref, w1_ref, w2_ref, bn_ref, mask_ref, out_ref, taps_ref):
        mask = mask_ref[...]              # (1, XP)  1.0 at valid (non-halo) positions
        x_f32 = xpad_ref[...]             # (Cp, XP) zero-padded input, channels-major
        bn = bn_ref[...]                  # (Cp, 4)  columns = [g1, b1, g2, b2]
        g1, b1 = bn[:, 0:1], bn[:, 1:2]
        g2, b2 = bn[:, 2:3], bn[:, 3:4]

        def conv_bn(src, w_ref, g, b):
            # im2col built in VMEM via 9 static lane rotations (XLU slot); no
            # HBM tap materialization.  taps[k*Cp + ci, j] == src[ci, j + s_k]
            # for every valid output position j (halo outputs are garbage and
            # are masked out of the BN statistics below / sliced off outside).
            for k, s in enumerate(shifts):
                taps_ref[k * Cp:(k + 1) * Cp, :] = pltpu.roll(
                    src, shift=(-s) % XP, axis=1)
            # One fused MXU matmul per conv: (Cp, 9*Cp) x (9*Cp, XP),
            # bf16 operands, f32 accumulation.
            acc = jnp.dot(w_ref[...], taps_ref[...].astype(jnp.bfloat16),
                          preferred_element_type=jnp.float32)        # (Cp, XP)
            # BatchNorm2d training-mode forward: per-channel batch mean and
            # biased variance over valid positions, single pass E[x], E[x^2].
            am = acc * mask
            s1 = jnp.sum(am, axis=1, keepdims=True)                  # (Cp, 1)
            s2 = jnp.sum(am * acc, axis=1, keepdims=True)            # (Cp, 1)
            mean = s1 * inv_n
            var = jnp.maximum(s2 * inv_n - mean * mean, 0.0)
            # Fold normalize + affine into a per-channel scale/shift so only
            # two full-size VPU ops touch the (Cp, XP) tensor.
            scale = g * lax.rsqrt(var + eps)                         # (Cp, 1)
            shift = b - mean * scale                                 # (Cp, 1)
            return acc * scale + shift

        # half 1: relu(bn1(conv1(x)));  *mask re-imposes the zero halo so the
        # intermediate activation is correctly zero-padded for conv2.
        mid = jnp.maximum(conv_bn(x_f32, w1_ref, g1, b1), 0.0) * mask
        # half 2: relu(bn2(conv2(mid)) + x)   (residual comes straight from the
        # already-VMEM-resident input; no zero-residual DMA).
        out = conv_bn(mid, w2_ref, g2, b2) + x_f32
        out_ref[...] = jnp.maximum(out, 0.0)

    return kernel


def _fuse_weights(w, Cp):
    """(C, C, 3, 3) -> bf16 (Cp, 9*Cp); column index = (dy*3+dx)*Cp + ci."""
    C = w.shape[0]
    wp = jnp.pad(w, ((0, Cp - C), (0, Cp - C), (0, 0), (0, 0)))
    return jnp.transpose(wp, (0, 2, 3, 1)).reshape(Cp, 9 * Cp).astype(jnp.bfloat16)


@jax.jit
def residual_block(x, w1, g1, b1, w2, g2, b2):
    """Fused Pallas ResidualBlock forward.  x: (N, C, H, W) float32 (NCHW)."""
    N, C, H, W = x.shape
    Hp, Wp = H + 2, W + 2
    Cp = max(8, -(-C // 8) * 8)          # channels padded to the sublane tile
    Xp = N * Hp * Wp                     # flattened zero-padded spatial axis
    XP = -(-Xp // 128) * 128             # lane-dense (multiple of 128)
    n_valid = N * H * W

    # Channels-major, zero-padded, flattened activation.  One transpose at the
    # block's external boundary; everything interior stays in this layout.
    xpad = jnp.pad(x, ((0, 0), (0, Cp - C), (1, 1), (1, 1)))        # (N,Cp,Hp,Wp)
    xflat = jnp.transpose(xpad, (1, 0, 2, 3)).reshape(Cp, Xp)
    xflat = jnp.pad(xflat, ((0, 0), (0, XP - Xp)))                  # (Cp, XP)

    # Validity mask: 1 at interior positions, 0 at halo / trailing lane pad.
    valid = np.zeros((N, Hp, Wp), np.float32)
    valid[:, 1:1 + H, 1:1 + W] = 1.0
    mask_np = np.zeros((1, XP), np.float32)
    mask_np[0, :Xp] = valid.reshape(-1)
    mask = jnp.asarray(mask_np)

    # Flattened-axis offset of each 3x3 tap (static Python ints).
    shifts = tuple((dy - 1) * Wp + (dx - 1) for dy in range(3) for dx in range(3))

    w1f = _fuse_weights(w1, Cp)
    w2f = _fuse_weights(w2, Cp)
    # Pack the four per-channel BN vectors into one (Cp, 4) operand.
    g1p = jnp.pad(g1, (0, Cp - C), constant_values=1.0)
    b1p = jnp.pad(b1, (0, Cp - C))
    g2p = jnp.pad(g2, (0, Cp - C), constant_values=1.0)
    b2p = jnp.pad(b2, (0, Cp - C))
    bnp = jnp.stack([g1p, b1p, g2p, b2p], axis=1)                   # (Cp, 4)

    vmem = pl.BlockSpec(memory_space=pltpu.MemorySpace.VMEM)
    out_flat = pl.pallas_call(
        _make_residual_block_kernel(Cp, XP, shifts, n_valid, EPS),
        out_shape=jax.ShapeDtypeStruct((Cp, XP), jnp.float32),
        in_specs=[vmem] * 5,
        out_specs=vmem,
        scratch_shapes=[pltpu.VMEM((9 * Cp, XP), jnp.float32)],
        compiler_params=pltpu.CompilerParams(vmem_limit_bytes=32 * 1024 * 1024),
    )(xflat, w1f, w2f, bnp, mask)

    out = out_flat[:, :Xp].reshape(Cp, N, Hp, Wp)[:C, :, 1:1 + H, 1:1 + W]
    return jnp.transpose(out, (1, 0, 2, 3))


def _reference(x, w1, g1, b1, w2, g2, b2):
    """Pure-JAX reference mirroring the PyTorch forward (training-mode BN)."""
    def conv(y, w):
        return lax.conv_general_dilated(
            y, w, (1, 1), "SAME",
            dimension_numbers=("NCHW", "OIHW", "NCHW"))

    def bn(y, g, b):
        m = jnp.mean(y, axis=(0, 2, 3), keepdims=True)
        v = jnp.mean((y - m) ** 2, axis=(0, 2, 3), keepdims=True)
        return (y - m) * lax.rsqrt(v + EPS) * g.reshape(1, -1, 1, 1) \
            + b.reshape(1, -1, 1, 1)

    out = jax.nn.relu(bn(conv(x, w1), g1, b1))
    out = bn(conv(out, w2), g2, b2)
    return jax.nn.relu(out + x)


if __name__ == "__main__":
    N, C, H, W = 2, 4, 16, 16
    key = jax.random.PRNGKey(0)
    kx, k1, k2, kg1, kb1, kg2, kb2 = jax.random.split(key, 7)

    x = jax.random.normal(kx, (N, C, H, W), jnp.float32)
    # Deterministic synthetic parameters (conv layers are bias-free per the module).
    w1 = 0.1 * jax.random.normal(k1, (C, C, 3, 3), jnp.float32)
    w2 = 0.1 * jax.random.normal(k2, (C, C, 3, 3), jnp.float32)
    g1 = 1.0 + 0.1 * jax.random.normal(kg1, (C,), jnp.float32)
    b1 = 0.1 * jax.random.normal(kb1, (C,), jnp.float32)
    g2 = 1.0 + 0.1 * jax.random.normal(kg2, (C,), jnp.float32)
    b2 = 0.1 * jax.random.normal(kb2, (C,), jnp.float32)

    out = residual_block(x, w1, g1, b1, w2, g2, b2)
    out = jax.block_until_ready(out)

    ref = _reference(x, w1, g1, b1, w2, g2, b2)
    # 2e-2 tolerance covers the bf16 MXU operands + one-pass BN variance.
    np.testing.assert_allclose(np.asarray(out), np.asarray(ref), rtol=2e-2, atol=2e-2)
    print("KERNEL_OK")
</pallas_src>

<mosaic_0001>
module attributes {stable_mosaic.version = 11 : i64} {
  func.func @kernel(%arg0: memref<8x768xf32, #tpu.memory_space<vmem>>, %arg1: memref<8x72xbf16, #tpu.memory_space<vmem>>, %arg2: memref<8x72xbf16, #tpu.memory_space<vmem>>, %arg3: memref<8x4xf32, #tpu.memory_space<vmem>>, %arg4: memref<1x768xf32, #tpu.memory_space<vmem>>, %arg5: memref<8x768xf32, #tpu.memory_space<vmem>>, %arg6: memref<72x768xf32, #tpu.memory_space<vmem>>) attributes {dimension_semantics = [], scalar_prefetch = 0 : i64, scratch_operands = 1 : i64, tpu.core_type = #tpu.core_type<tc>} {
    %c0 = arith.constant 0 : index
    %c0_0 = arith.constant 0 : index
    %0 = vector.load %arg4[%c0, %c0_0] : memref<1x768xf32, #tpu.memory_space<vmem>>, vector<1x768xf32>
    %c0_1 = arith.constant 0 : index
    %c0_2 = arith.constant 0 : index
    %1 = vector.load %arg0[%c0_1, %c0_2] : memref<8x768xf32, #tpu.memory_space<vmem>>, vector<8x768xf32>
    %c0_3 = arith.constant 0 : index
    %c0_4 = arith.constant 0 : index
    %2 = vector.load %arg3[%c0_3, %c0_4] : memref<8x4xf32, #tpu.memory_space<vmem>>, vector<8x4xf32>
    %3 = vector.extract_strided_slice %2 {offsets = [0, 0], sizes = [8, 1], strides = [1, 1]} : vector<8x4xf32> to vector<8x1xf32>
    %4 = vector.extract_strided_slice %2 {offsets = [0, 1], sizes = [8, 1], strides = [1, 1]} : vector<8x4xf32> to vector<8x1xf32>
    %5 = vector.extract_strided_slice %2 {offsets = [0, 2], sizes = [8, 1], strides = [1, 1]} : vector<8x4xf32> to vector<8x1xf32>
    %6 = vector.extract_strided_slice %2 {offsets = [0, 3], sizes = [8, 1], strides = [1, 1]} : vector<8x4xf32> to vector<8x1xf32>
    %c19_i32 = arith.constant 19 : i32
    %7 = tpu.dynamic_rotate %1 by %c19_i32 dim 1 : vector<8x768xf32>, i32 -> vector<8x768xf32>
    %c0_5 = arith.constant 0 : index
    %c0_6 = arith.constant 0 : index
    %8 = vector.load %arg6[%c0_5, %c0_6] : memref<72x768xf32, #tpu.memory_space<vmem>>, vector<8x768xf32>
    tpu.vector_store %arg6[%c0_5, %c0_6], %7 {strides = array<i32>} : memref<72x768xf32, #tpu.memory_space<vmem>>, vector<8x768xf32>,
    %c18_i32 = arith.constant 18 : i32
    %9 = tpu.dynamic_rotate %1 by %c18_i32 dim 1 : vector<8x768xf32>, i32 -> vector<8x768xf32>
    %c8 = arith.constant 8 : index
    %c0_7 = arith.constant 0 : index
    %10 = vector.load %arg6[%c8, %c0_7] : memref<72x768xf32, #tpu.memory_space<vmem>>, vector<8x768xf32>
    tpu.vector_store %arg6[%c8, %c0_7], %9 {strides = array<i32>} : memref<72x768xf32, #tpu.memory_space<vmem>>, vector<8x768xf32>,
    %c17_i32 = arith.constant 17 : i32
    %11 = tpu.dynamic_rotate %1 by %c17_i32 dim 1 : vector<8x768xf32>, i32 -> vector<8x768xf32>
    %c16 = arith.constant 16 : index
    %c0_8 = arith.constant 0 : index
    %12 = vector.load %arg6[%c16, %c0_8] : memref<72x768xf32, #tpu.memory_space<vmem>>, vector<8x768xf32>
    tpu.vector_store %arg6[%c16, %c0_8], %11 {strides = array<i32>} : memref<72x768xf32, #tpu.memory_space<vmem>>, vector<8x768xf32>,
    %c1_i32 = arith.constant 1 : i32
    %13 = tpu.dynamic_rotate %1 by %c1_i32 dim 1 : vector<8x768xf32>, i32 -> vector<8x768xf32>
    %c24 = arith.constant 24 : index
    %c0_9 = arith.constant 0 : index
    %14 = vector.load %arg6[%c24, %c0_9] : memref<72x768xf32, #tpu.memory_space<vmem>>, vector<8x768xf32>
    tpu.vector_store %arg6[%c24, %c0_9], %13 {strides = array<i32>} : memref<72x768xf32, #tpu.memory_space<vmem>>, vector<8x768xf32>,
    %c0_i32 = arith.constant 0 : i32
    %15 = tpu.dynamic_rotate %1 by %c0_i32 dim 1 : vector<8x768xf32>, i32 -> vector<8x768xf32>
    %c32 = arith.constant 32 : index
    %c0_10 = arith.constant 0 : index
    %16 = vector.load %arg6[%c32, %c0_10] : memref<72x768xf32, #tpu.memory_space<vmem>>, vector<8x768xf32>
    tpu.vector_store %arg6[%c32, %c0_10], %15 {strides = array<i32>} : memref<72x768xf32, #tpu.memory_space<vmem>>, vector<8x768xf32>,
    %c767_i32 = arith.constant 767 : i32
    %17 = tpu.dynamic_rotate %1 by %c767_i32 dim 1 : vector<8x768xf32>, i32 -> vector<8x768xf32>
    %c40 = arith.constant 40 : index
    %c0_11 = arith.constant 0 : index
    %18 = vector.load %arg6[%c40, %c0_11] : memref<72x768xf32, #tpu.memory_space<vmem>>, vector<8x768xf32>
    tpu.vector_store %arg6[%c40, %c0_11], %17 {strides = array<i32>} : memref<72x768xf32, #tpu.memory_space<vmem>>, vector<8x768xf32>,
    %c751_i32 = arith.constant 751 : i32
    %19 = tpu.dynamic_rotate %1 by %c751_i32 dim 1 : vector<8x768xf32>, i32 -> vector<8x768xf32>
    %c48 = arith.constant 48 : index
    %c0_12 = arith.constant 0 : index
    %20 = vector.load %arg6[%c48, %c0_12] : memref<72x768xf32, #tpu.memory_space<vmem>>, vector<8x768xf32>
    tpu.vector_store %arg6[%c48, %c0_12], %19 {strides = array<i32>} : memref<72x768xf32, #tpu.memory_space<vmem>>, vector<8x768xf32>,
    %c750_i32 = arith.constant 750 : i32
    %21 = tpu.dynamic_rotate %1 by %c750_i32 dim 1 : vector<8x768xf32>, i32 -> vector<8x768xf32>
    %c56 = arith.constant 56 : index
    %c0_13 = arith.constant 0 : index
    %22 = vector.load %arg6[%c56, %c0_13] : memref<72x768xf32, #tpu.memory_space<vmem>>, vector<8x768xf32>
    tpu.vector_store %arg6[%c56, %c0_13], %21 {strides = array<i32>} : memref<72x768xf32, #tpu.memory_space<vmem>>, vector<8x768xf32>,
    %c749_i32 = arith.constant 749 : i32
    %23 = tpu.dynamic_rotate %1 by %c749_i32 dim 1 : vector<8x768xf32>, i32 -> vector<8x768xf32>
    %c64 = arith.constant 64 : index
    %c0_14 = arith.constant 0 : index
    %24 = vector.load %arg6[%c64, %c0_14] : memref<72x768xf32, #tpu.memory_space<vmem>>, vector<8x768xf32>
    tpu.vector_store %arg6[%c64, %c0_14], %23 {strides = array<i32>} : memref<72x768xf32, #tpu.memory_space<vmem>>, vector<8x768xf32>,
    %c0_15 = arith.constant 0 : index
    %c0_16 = arith.constant 0 : index
    %25 = vector.load %arg1[%c0_15, %c0_16] : memref<8x72xbf16, #tpu.memory_space<vmem>>, vector<8x72xbf16>
    %c0_17 = arith.constant 0 : index
    %c0_18 = arith.constant 0 : index
    %26 = vector.load %arg6[%c0_17, %c0_18] : memref<72x768xf32, #tpu.memory_space<vmem>>, vector<72x768xf32>
    %27 = arith.truncf %26 : vector<72x768xf32> to vector<72x768xbf16>
    %cst = arith.constant dense<0.000000e+00> : vector<8x768xf32>
    %28 = tpu.matmul %25, %27, %cst {dimension_numbers = #tpu.dot_dimension_numbers<[1], [0], [0], [1], [0, 0, 1, 1], [], []>} : vector<8x72xbf16>, vector<72x768xbf16>, vector<8x768xf32> -> vector<8x768xf32>
    %29 = vector.broadcast %0 : vector<1x768xf32> to vector<8x768xf32>
    %30 = arith.mulf %28, %29 : vector<8x768xf32>
    %cst_19 = arith.constant dense<0.000000e+00> : vector<8xf32>
    %31 = vector.multi_reduction <add>, %30, %cst_19 [1] : vector<8x768xf32> to vector<8xf32>
    %32 = vector.shape_cast %31 : vector<8xf32> to vector<8x1xf32>
    %33 = arith.mulf %30, %28 : vector<8x768xf32>
    %cst_20 = arith.constant dense<0.000000e+00> : vector<8xf32>
    %34 = vector.multi_reduction <add>, %33, %cst_20 [1] : vector<8x768xf32> to vector<8xf32>
    %35 = vector.shape_cast %34 : vector<8xf32> to vector<8x1xf32>
    %cst_21 = arith.constant 0.001953125 : f32
    %36 = vector.broadcast %cst_21 : f32 to vector<8x1xf32>
    %37 = arith.mulf %32, %36 : vector<8x1xf32>
    %cst_22 = arith.constant 0.001953125 : f32
    %38 = vector.broadcast %cst_22 : f32 to vector<8x1xf32>
    %39 = arith.mulf %35, %38 : vector<8x1xf32>
    %40 = arith.mulf %37, %37 : vector<8x1xf32>
    %41 = arith.subf %39, %40 : vector<8x1xf32>
    %cst_23 = arith.constant 0.000000e+00 : f32
    %42 = vector.broadcast %cst_23 : f32 to vector<8x1xf32>
    %43 = arith.maximumf %41, %42 : vector<8x1xf32>
    %cst_24 = arith.constant 9.99999974E-6 : f32
    %44 = vector.broadcast %cst_24 : f32 to vector<8x1xf32>
    %45 = arith.addf %43, %44 : vector<8x1xf32>
    %46 = math.rsqrt %45 : vector<8x1xf32>
    %47 = arith.mulf %3, %46 : vector<8x1xf32>
    %48 = arith.mulf %37, %47 : vector<8x1xf32>
    %49 = arith.subf %4, %48 : vector<8x1xf32>
    %50 = vector.broadcast %47 : vector<8x1xf32> to vector<8x768xf32>
    %51 = arith.mulf %28, %50 : vector<8x768xf32>
    %52 = vector.broadcast %49 : vector<8x1xf32> to vector<8x768xf32>
    %53 = arith.addf %51, %52 : vector<8x768xf32>
    %cst_25 = arith.constant 0.000000e+00 : f32
    %54 = vector.broadcast %cst_25 : f32 to vector<8x768xf32>
    %55 = arith.maximumf %53, %54 : vector<8x768xf32>
    %56 = vector.broadcast %0 : vector<1x768xf32> to vector<8x768xf32>
    %57 = arith.mulf %55, %56 : vector<8x768xf32>
    %c19_i32_26 = arith.constant 19 : i32
    %58 = tpu.dynamic_rotate %57 by %c19_i32_26 dim 1 : vector<8x768xf32>, i32 -> vector<8x768xf32>
    %c0_27 = arith.constant 0 : index
    %c0_28 = arith.constant 0 : index
    %59 = vector.load %arg6[%c0_27, %c0_28] : memref<72x768xf32, #tpu.memory_space<vmem>>, vector<8x768xf32>
    tpu.vector_store %arg6[%c0_27, %c0_28], %58 {strides = array<i32>} : memref<72x768xf32, #tpu.memory_space<vmem>>, vector<8x768xf32>,
    %c18_i32_29 = arith.constant 18 : i32
    %60 = tpu.dynamic_rotate %57 by %c18_i32_29 dim 1 : vector<8x768xf32>, i32 -> vector<8x768xf32>
    %c8_30 = arith.constant 8 : index
    %c0_31 = arith.constant 0 : index
    %61 = vector.load %arg6[%c8_30, %c0_31] : memref<72x768xf32, #tpu.memory_space<vmem>>, vector<8x768xf32>
    tpu.vector_store %arg6[%c8_30, %c0_31], %60 {strides = array<i32>} : memref<72x768xf32, #tpu.memory_space<vmem>>, vector<8x768xf32>,
    %c17_i32_32 = arith.constant 17 : i32
    %62 = tpu.dynamic_rotate %57 by %c17_i32_32 dim 1 : vector<8x768xf32>, i32 -> vector<8x768xf32>
    %c16_33 = arith.constant 16 : index
    %c0_34 = arith.constant 0 : index
    %63 = vector.load %arg6[%c16_33, %c0_34] : memref<72x768xf32, #tpu.memory_space<vmem>>, vector<8x768xf32>
    tpu.vector_store %arg6[%c16_33, %c0_34], %62 {strides = array<i32>} : memref<72x768xf32, #tpu.memory_space<vmem>>, vector<8x768xf32>,
    %c1_i32_35 = arith.constant 1 : i32
    %64 = tpu.dynamic_rotate %57 by %c1_i32_35 dim 1 : vector<8x768xf32>, i32 -> vector<8x768xf32>
    %c24_36 = arith.constant 24 : index
    %c0_37 = arith.constant 0 : index
    %65 = vector.load %arg6[%c24_36, %c0_37] : memref<72x768xf32, #tpu.memory_space<vmem>>, vector<8x768xf32>
    tpu.vector_store %arg6[%c24_36, %c0_37], %64 {strides = array<i32>} : memref<72x768xf32, #tpu.memory_space<vmem>>, vector<8x768xf32>,
    %c0_i32_38 = arith.constant 0 : i32
    %66 = tpu.dynamic_rotate %57 by %c0_i32_38 dim 1 : vector<8x768xf32>, i32 -> vector<8x768xf32>
    %c32_39 = arith.constant 32 : index
    %c0_40 = arith.constant 0 : index
    %67 = vector.load %arg6[%c32_39, %c0_40] : memref<72x768xf32, #tpu.memory_space<vmem>>, vector<8x768xf32>
    tpu.vector_store %arg6[%c32_39, %c0_40], %66 {strides = array<i32>} : memref<72x768xf32, #tpu.memory_space<vmem>>, vector<8x768xf32>,
    %c767_i32_41 = arith.constant 767 : i32
    %68 = tpu.dynamic_rotate %57 by %c767_i32_41 dim 1 : vector<8x768xf32>, i32 -> vector<8x768xf32>
    %c40_42 = arith.constant 40 : index
    %c0_43 = arith.constant 0 : index
    %69 = vector.load %arg6[%c40_42, %c0_43] : memref<72x768xf32, #tpu.memory_space<vmem>>, vector<8x768xf32>
    tpu.vector_store %arg6[%c40_42, %c0_43], %68 {strides = array<i32>} : memref<72x768xf32, #tpu.memory_space<vmem>>, vector<8x768xf32>,
    %c751_i32_44 = arith.constant 751 : i32
    %70 = tpu.dynamic_rotate %57 by %c751_i32_44 dim 1 : vector<8x768xf32>, i32 -> vector<8x768xf32>
    %c48_45 = arith.constant 48 : index
    %c0_46 = arith.constant 0 : index
    %71 = vector.load %arg6[%c48_45, %c0_46] : memref<72x768xf32, #tpu.memory_space<vmem>>, vector<8x768xf32>
    tpu.vector_store %arg6[%c48_45, %c0_46], %70 {strides = array<i32>} : memref<72x768xf32, #tpu.memory_space<vmem>>, vector<8x768xf32>,
    %c750_i32_47 = arith.constant 750 : i32
    %72 = tpu.dynamic_rotate %57 by %c750_i32_47 dim 1 : vector<8x768xf32>, i32 -> vector<8x768xf32>
    %c56_48 = arith.constant 56 : index
    %c0_49 = arith.constant 0 : index
    %73 = vector.load %arg6[%c56_48, %c0_49] : memref<72x768xf32, #tpu.memory_space<vmem>>, vector<8x768xf32>
    tpu.vector_store %arg6[%c56_48, %c0_49], %72 {strides = array<i32>} : memref<72x768xf32, #tpu.memory_space<vmem>>, vector<8x768xf32>,
    %c749_i32_50 = arith.constant 749 : i32
    %74 = tpu.dynamic_rotate %57 by %c749_i32_50 dim 1 : vector<8x768xf32>, i32 -> vector<8x768xf32>
    %c64_51 = arith.constant 64 : index
    %c0_52 = arith.constant 0 : index
    %75 = vector.load %arg6[%c64_51, %c0_52] : memref<72x768xf32, #tpu.memory_space<vmem>>, vector<8x768xf32>
    tpu.vector_store %arg6[%c64_51, %c0_52], %74 {strides = array<i32>} : memref<72x768xf32, #tpu.memory_space<vmem>>, vector<8x768xf32>,
    %c0_53 = arith.constant 0 : index
    %c0_54 = arith.constant 0 : index
    %76 = vector.load %arg2[%c0_53, %c0_54] : memref<8x72xbf16, #tpu.memory_space<vmem>>, vector<8x72xbf16>
    %c0_55 = arith.constant 0 : index
    %c0_56 = arith.constant 0 : index
    %77 = vector.load %arg6[%c0_55, %c0_56] : memref<72x768xf32, #tpu.memory_space<vmem>>, vector<72x768xf32>
    %78 = arith.truncf %77 : vector<72x768xf32> to vector<72x768xbf16>
    %cst_57 = arith.constant dense<0.000000e+00> : vector<8x768xf32>
    %79 = tpu.matmul %76, %78, %cst_57 {dimension_numbers = #tpu.dot_dimension_numbers<[1], [0], [0], [1], [0, 0, 1, 1], [], []>} : vector<8x72xbf16>, vector<72x768xbf16>, vector<8x768xf32> -> vector<8x768xf32>
    %80 = vector.broadcast %0 : vector<1x768xf32> to vector<8x768xf32>
    %81 = arith.mulf %79, %80 : vector<8x768xf32>
    %cst_58 = arith.constant dense<0.000000e+00> : vector<8xf32>
    %82 = vector.multi_reduction <add>, %81, %cst_58 [1] : vector<8x768xf32> to vector<8xf32>
    %83 = vector.shape_cast %82 : vector<8xf32> to vector<8x1xf32>
    %84 = arith.mulf %81, %79 : vector<8x768xf32>
    %cst_59 = arith.constant dense<0.000000e+00> : vector<8xf32>
    %85 = vector.multi_reduction <add>, %84, %cst_59 [1] : vector<8x768xf32> to vector<8xf32>
    %86 = vector.shape_cast %85 : vector<8xf32> to vector<8x1xf32>
    %cst_60 = arith.constant 0.001953125 : f32
    %87 = vector.broadcast %cst_60 : f32 to vector<8x1xf32>
    %88 = arith.mulf %83, %87 : vector<8x1xf32>
    %cst_61 = arith.constant 0.001953125 : f32
    %89 = vector.broadcast %cst_61 : f32 to vector<8x1xf32>
    %90 = arith.mulf %86, %89 : vector<8x1xf32>
    %91 = arith.mulf %88, %88 : vector<8x1xf32>
    %92 = arith.subf %90, %91 : vector<8x1xf32>
    %cst_62 = arith.constant 0.000000e+00 : f32
    %93 = vector.broadcast %cst_62 : f32 to vector<8x1xf32>
    %94 = arith.maximumf %92, %93 : vector<8x1xf32>
    %cst_63 = arith.constant 9.99999974E-6 : f32
    %95 = vector.broadcast %cst_63 : f32 to vector<8x1xf32>
    %96 = arith.addf %94, %95 : vector<8x1xf32>
    %97 = math.rsqrt %96 : vector<8x1xf32>
    %98 = arith.mulf %5, %97 : vector<8x1xf32>
    %99 = arith.mulf %88, %98 : vector<8x1xf32>
    %100 = arith.subf %6, %99 : vector<8x1xf32>
    %101 = vector.broadcast %98 : vector<8x1xf32> to vector<8x768xf32>
    %102 = arith.mulf %79, %101 : vector<8x768xf32>
    %103 = vector.broadcast %100 : vector<8x1xf32> to vector<8x768xf32>
    %104 = arith.addf %102, %103 : vector<8x768xf32>
    %105 = arith.addf %104, %1 : vector<8x768xf32>
    %cst_64 = arith.constant 0.000000e+00 : f32
    %106 = vector.broadcast %cst_64 : f32 to vector<8x768xf32>
    %107 = arith.maximumf %105, %106 : vector<8x768xf32>
    %c0_65 = arith.constant 0 : index
    %c0_66 = arith.constant 0 : index
    %108 = vector.load %arg5[%c0_65, %c0_66] : memref<8x768xf32, #tpu.memory_space<vmem>>, vector<8x768xf32>
    tpu.vector_store %arg5[%c0_65, %c0_66], %107 {strides = array<i32>} : memref<8x768xf32, #tpu.memory_space<vmem>>, vector<8x768xf32>,
    return
  }
}

</mosaic_0001>

<llo_original>
// kernel: residual_block.1
$region0: #{residual_block.1}
  #allocation0 [shape = 'u32[]', space=smem, size = 0x4, offset = 0x4, fixed_abs, tag = 'smem constant byte address 0x4 - core index']
  #allocation1 [shape = 'u32[144,128]{1,0:T(1,128)}', space=vmem, size = 0x12000, scoped, tag = 'internal scratch']
  #allocation2 [shape = 'f32[72,768]{1,0:T(8,128)}', space=vmem, size = 0x36000, scoped, tag = 'scratch operand']
  %s0 = inlined_call_operand.vmem [shape: f32[8,768], index: 0, kind: input, shape index: {}]
  %s1 = inlined_call_operand.vmem [shape: bf16[8,72], index: 1, kind: input, shape index: {}]
  %s2 = inlined_call_operand.vmem [shape: bf16[8,72], index: 2, kind: input, shape index: {}]
  %s3 = inlined_call_operand.vmem [shape: f32[8,4], index: 3, kind: input, shape index: {}]
  %s4 = inlined_call_operand.vmem [shape: f32[1,768], index: 4, kind: input, shape index: {}]
  %s5 = inlined_call_operand.vmem [shape: f32[8,768], index: 5, kind: output, shape index: {}]
  %s6 = sld [smem:[#allocation0]]
  $region30: #{residual_block.1} parent=0
    _
  %s8 = ssub.s32 1, %s6
  %s9 = scalar_select 0, %s8, %s6
  // Predicated region
  $region2: #{residual_block.1} parent=0 // pred_check
    _
  $region3: #{residual_block.1} parent=0 // pred_check_branch
    %11 = sbr.rel (0) target = $region5
  $region4: #{residual_block.1} parent=0 // pred_region
    _
  $region5: #{residual_block.1} parent=0 // pred_fallthru
    _
  // Predicated region
  $region6: #{residual_block.1} parent=0 // pred_check
    _
  $region7: #{residual_block.1} parent=0 // pred_check_branch
    %13 = sbr.rel (0) target = $region9
  $region8: #{residual_block.1} parent=0 // pred_region
    _
  $region9: #{residual_block.1} parent=0 // pred_fallthru
    _
  // Predicated region
  $region10: #{residual_block.1} parent=0 // pred_check
    _
  $region11: #{residual_block.1} parent=0 // pred_check_branch
    %15 = sbr.rel (0) target = $region13
  $region12: #{residual_block.1} parent=0 // pred_region
    _
  $region13: #{residual_block.1} parent=0 // pred_fallthru
    _
  // Predicated region
  $region14: #{residual_block.1} parent=0 // pred_check
    _
  $region15: #{residual_block.1} parent=0 // pred_check_branch
    %17 = sbr.rel (0) target = $region17
  $region16: #{residual_block.1} parent=0 // pred_region
    _
  $region17: #{residual_block.1} parent=0 // pred_fallthru
    _
  // Predicated region
  $region18: #{residual_block.1} parent=0 // pred_check
    _
  $region19: #{residual_block.1} parent=0 // pred_check_branch
    %19 = sbr.rel (0) target = $region21
  $region20: #{residual_block.1} parent=0 // pred_region
    _
  $region21: #{residual_block.1} parent=0 // pred_fallthru
    _
  %v21 = vld [vmem:[%s4] sm:$0x3f]
  %v22 = vld [vmem:[%s0] sm:$0xff]
  %v23 = vld [vmem:[%s0 + $0x8] sm:$0xff]
  %v24 = vld [vmem:[%s0 + $0x10] sm:$0xff]
  %v25 = vld [vmem:[%s0 + $0x18] sm:$0xff]
  %v26 = vld [vmem:[%s0 + $0x20] sm:$0xff]
  %v27 = vld [vmem:[%s0 + $0x28] sm:$0xff]
  %v28 = vld [vmem:[%s3] sm:$0xff]
  %29 = vrot.lane.b32.xlu0 %v22, 19
  %v30 = vpop.permute.xlu0 %29
  %31 = vrot.lane.b32.xlu0 %v23, 19
  %v32 = vpop.permute.xlu0 %31
  %33 = vrot.lane.b32.xlu0 %v24, 19
  %v34 = vpop.permute.xlu0 %33
  %35 = vrot.lane.b32.xlu0 %v25, 19
  %v36 = vpop.permute.xlu0 %35
  %37 = vrot.lane.b32.xlu0 %v26, 19
  %v38 = vpop.permute.xlu0 %37
  %39 = vrot.lane.b32.xlu0 %v27, 19
  %v40 = vpop.permute.xlu0 %39
  %v41 = vlaneseq
  %v42 = vand.u32 %v41, 127
  %vm43 = vcmp.lt.s32.totalorder %v42, 19
  %v44 = vsel %vm43, %v38, %v40
  %v45 = vsel %vm43, %v36, %v38
  %v46 = vsel %vm43, %v34, %v36
  %v47 = vsel %vm43, %v32, %v34
  %v48 = vsel %vm43, %v30, %v32
  %v49 = vsel %vm43, %v40, %v30
  %50 = vst [vmem:[#allocation2] sm:$0xff] %v49
  %51 = vst [vmem:[#allocation2 + $0x8] sm:$0xff] %v48
  %52 = vst [vmem:[#allocation2 + $0x10] sm:$0xff] %v47
  %53 = vst [vmem:[#allocation2 + $0x18] sm:$0xff] %v46
  %54 = vst [vmem:[#allocation2 + $0x20] sm:$0xff] %v45
  %55 = vst [vmem:[#allocation2 + $0x28] sm:$0xff] %v44
  %56 = vrot.lane.b32.xlu0 %v22, 18
  %v57 = vpop.permute.xlu0 %56
  %58 = vrot.lane.b32.xlu0 %v23, 18
  %v59 = vpop.permute.xlu0 %58
  %60 = vrot.lane.b32.xlu0 %v24, 18
  %v61 = vpop.permute.xlu0 %60
  %62 = vrot.lane.b32.xlu0 %v25, 18
  %v63 = vpop.permute.xlu0 %62
  %64 = vrot.lane.b32.xlu0 %v26, 18
  %v65 = vpop.permute.xlu0 %64
  %66 = vrot.lane.b32.xlu0 %v27, 18
  %v67 = vpop.permute.xlu0 %66
  %vm68 = vcmp.lt.s32.totalorder %v42, 18
  %v69 = vsel %vm68, %v65, %v67
  %v70 = vsel %vm68, %v63, %v65
  %v71 = vsel %vm68, %v61, %v63
  %v72 = vsel %vm68, %v59, %v61
  %v73 = vsel %vm68, %v57, %v59
  %v74 = vsel %vm68, %v67, %v57
  %75 = vst [vmem:[#allocation2 + $0x30] sm:$0xff] %v74
  %76 = vst [vmem:[#allocation2 + $0x38] sm:$0xff] %v73
  %77 = vst [vmem:[#allocation2 + $0x40] sm:$0xff] %v72
  %78 = vst [vmem:[#allocation2 + $0x48] sm:$0xff] %v71
  %79 = vst [vmem:[#allocation2 + $0x50] sm:$0xff] %v70
  %80 = vst [vmem:[#allocation2 + $0x58] sm:$0xff] %v69
  %81 = vrot.lane.b32.xlu0 %v22, 17
  %v82 = vpop.permute.xlu0 %81
  %83 = vrot.lane.b32.xlu0 %v23, 17
  %v84 = vpop.permute.xlu0 %83
  %85 = vrot.lane.b32.xlu0 %v24, 17
  %v86 = vpop.permute.xlu0 %85
  %87 = vrot.lane.b32.xlu0 %v25, 17
  %v88 = vpop.permute.xlu0 %87
  %89 = vrot.lane.b32.xlu0 %v26, 17
  %v90 = vpop.permute.xlu0 %89
  %91 = vrot.lane.b32.xlu0 %v27, 17
  %v92 = vpop.permute.xlu0 %91
  %vm93 = vcmp.lt.s32.totalorder %v42, 17
  %v94 = vsel %vm93, %v90, %v92
  %v95 = vsel %vm93, %v88, %v90
  %v96 = vsel %vm93, %v86, %v88
  %v97 = vsel %vm93, %v84, %v86
  %v98 = vsel %vm93, %v82, %v84
  %v99 = vsel %vm93, %v92, %v82
  %100 = vst [vmem:[#allocation2 + $0x60] sm:$0xff] %v99
  %101 = vst [vmem:[#allocation2 + $0x68] sm:$0xff] %v98
  %102 = vst [vmem:[#allocation2 + $0x70] sm:$0xff] %v97
  %103 = vst [vmem:[#allocation2 + $0x78] sm:$0xff] %v96
  %104 = vst [vmem:[#allocation2 + $0x80] sm:$0xff] %v95
  %105 = vst [vmem:[#allocation2 + $0x88] sm:$0xff] %v94
  %106 = vrot.lane.b32.xlu0 %v22, 1
  %v107 = vpop.permute.xlu0 %106
  %108 = vrot.lane.b32.xlu0 %v23, 1
  %v109 = vpop.permute.xlu0 %108
  %110 = vrot.lane.b32.xlu0 %v24, 1
  %v111 = vpop.permute.xlu0 %110
  %112 = vrot.lane.b32.xlu0 %v25, 1
  %v113 = vpop.permute.xlu0 %112
  %114 = vrot.lane.b32.xlu0 %v26, 1
  %v115 = vpop.permute.xlu0 %114
  %116 = vrot.lane.b32.xlu0 %v27, 1
  %v117 = vpop.permute.xlu0 %116
  %vm118 = vcmp.lt.s32.totalorder %v42, 1
  %v119 = vsel %vm118, %v115, %v117
  %v120 = vsel %vm118, %v113, %v115
  %v121 = vsel %vm118, %v111, %v113
  %v122 = vsel %vm118, %v109, %v111
  %v123 = vsel %vm118, %v107, %v109
  %v124 = vsel %vm118, %v117, %v107
  %125 = vst [vmem:[#allocation2 + $0x90] sm:$0xff] %v124
  %126 = vst [vmem:[#allocation2 + $0x98] sm:$0xff] %v123
  %127 = vst [vmem:[#allocation2 + $0xa0] sm:$0xff] %v122
  %128 = vst [vmem:[#allocation2 + $0xa8] sm:$0xff] %v121
  %129 = vst [vmem:[#allocation2 + $0xb0] sm:$0xff] %v120
  %130 = vst [vmem:[#allocation2 + $0xb8] sm:$0xff] %v119
  %131 = vst [vmem:[#allocation2 + $0xc0] sm:$0xff] %v22
  %132 = vst [vmem:[#allocation2 + $0xc8] sm:$0xff] %v23
  %133 = vst [vmem:[#allocation2 + $0xd0] sm:$0xff] %v24
  %134 = vst [vmem:[#allocation2 + $0xd8] sm:$0xff] %v25
  %135 = vst [vmem:[#allocation2 + $0xe0] sm:$0xff] %v26
  %136 = vst [vmem:[#allocation2 + $0xe8] sm:$0xff] %v27
  %137 = vrot.lane.b32.xlu0 %v22, 127
  %v138 = vpop.permute.xlu0 %137
  %139 = vrot.lane.b32.xlu0 %v23, 127
  %v140 = vpop.permute.xlu0 %139
  %141 = vrot.lane.b32.xlu0 %v24, 127
  %v142 = vpop.permute.xlu0 %141
  %143 = vrot.lane.b32.xlu0 %v25, 127
  %v144 = vpop.permute.xlu0 %143
  %145 = vrot.lane.b32.xlu0 %v26, 127
  %v146 = vpop.permute.xlu0 %145
  %147 = vrot.lane.b32.xlu0 %v27, 127
  %v148 = vpop.permute.xlu0 %147
  %vm149 = vcmp.lt.s32.totalorder %v42, 127
  %v150 = vsel %vm149, %v146, %v148
  %v151 = vsel %vm149, %v144, %v146
  %v152 = vsel %vm149, %v142, %v144
  %v153 = vsel %vm149, %v140, %v142
  %v154 = vsel %vm149, %v138, %v140
  %v155 = vsel %vm149, %v148, %v138
  %156 = vst [vmem:[#allocation2 + $0xf0] sm:$0xff] %v154
  %157 = vst [vmem:[#allocation2 + $0xf8] sm:$0xff] %v153
  %158 = vst [vmem:[#allocation2 + $0x100] sm:$0xff] %v152
  %159 = vst [vmem:[#allocation2 + $0x108] sm:$0xff] %v151
  %160 = vst [vmem:[#allocation2 + $0x110] sm:$0xff] %v150
  %161 = vst [vmem:[#allocation2 + $0x118] sm:$0xff] %v155
  %162 = vrot.lane.b32.xlu0 %v22, 111
  %v163 = vpop.permute.xlu0 %162
  %164 = vrot.lane.b32.xlu0 %v23, 111
  %v165 = vpop.permute.xlu0 %164
  %166 = vrot.lane.b32.xlu0 %v24, 111
  %v167 = vpop.permute.xlu0 %166
  %168 = vrot.lane.b32.xlu0 %v25, 111
  %v169 = vpop.permute.xlu0 %168
  %170 = vrot.lane.b32.xlu0 %v26, 111
  %v171 = vpop.permute.xlu0 %170
  %172 = vrot.lane.b32.xlu0 %v27, 111
  %v173 = vpop.permute.xlu0 %172
  %vm174 = vcmp.lt.s32.totalorder %v42, 111
  %v175 = vsel %vm174, %v171, %v173
  %v176 = vsel %vm174, %v169, %v171
  %v177 = vsel %vm174, %v167, %v169
  %v178 = vsel %vm174, %v165, %v167
  %v179 = vsel %vm174, %v163, %v165
  %v180 = vsel %vm174, %v173, %v163
  %181 = vst [vmem:[#allocation2 + $0x120] sm:$0xff] %v179
  %182 = vst [vmem:[#allocation2 + $0x128] sm:$0xff] %v178
  %183 = vst [vmem:[#allocation2 + $0x130] sm:$0xff] %v177
  %184 = vst [vmem:[#allocation2 + $0x138] sm:$0xff] %v176
  %185 = vst [vmem:[#allocation2 + $0x140] sm:$0xff] %v175
  %186 = vst [vmem:[#allocation2 + $0x148] sm:$0xff] %v180
  %187 = vrot.lane.b32.xlu0 %v22, 110
  %v188 = vpop.permute.xlu0 %187
  %189 = vrot.lane.b32.xlu0 %v23, 110
  %v190 = vpop.permute.xlu0 %189
  %191 = vrot.lane.b32.xlu0 %v24, 110
  %v192 = vpop.permute.xlu0 %191
  %193 = vrot.lane.b32.xlu0 %v25, 110
  %v194 = vpop.permute.xlu0 %193
  %195 = vrot.lane.b32.xlu0 %v26, 110
  %v196 = vpop.permute.xlu0 %195
  %197 = vrot.lane.b32.xlu0 %v27, 110
  %v198 = vpop.permute.xlu0 %197
  %vm199 = vcmp.lt.s32.totalorder %v42, 110
  %v200 = vsel %vm199, %v196, %v198
  %v201 = vsel %vm199, %v194, %v196
  %v202 = vsel %vm199, %v192, %v194
  %v203 = vsel %vm199, %v190, %v192
  %v204 = vsel %vm199, %v188, %v190
  %v205 = vsel %vm199, %v198, %v188
  %206 = vst [vmem:[#allocation2 + $0x150] sm:$0xff] %v204
  %207 = vst [vmem:[#allocation2 + $0x158] sm:$0xff] %v203
  %208 = vst [vmem:[#allocation2 + $0x160] sm:$0xff] %v202
  %209 = vst [vmem:[#allocation2 + $0x168] sm:$0xff] %v201
  %210 = vst [vmem:[#allocation2 + $0x170] sm:$0xff] %v200
  %211 = vst [vmem:[#allocation2 + $0x178] sm:$0xff] %v205
  %212 = vrot.lane.b32.xlu0 %v22, 109
  %v213 = vpop.permute.xlu0 %212
  %214 = vrot.lane.b32.xlu0 %v23, 109
  %v215 = vpop.permute.xlu0 %214
  %216 = vrot.lane.b32.xlu0 %v24, 109
  %v217 = vpop.permute.xlu0 %216
  %218 = vrot.lane.b32.xlu0 %v25, 109
  %v219 = vpop.permute.xlu0 %218
  %220 = vrot.lane.b32.xlu0 %v26, 109
  %v221 = vpop.permute.xlu0 %220
  %222 = vrot.lane.b32.xlu0 %v27, 109
  %v223 = vpop.permute.xlu0 %222
  %vm224 = vcmp.lt.s32.totalorder %v42, 109
  %v225 = vsel %vm224, %v221, %v223
  %v226 = vsel %vm224, %v219, %v221
  %v227 = vsel %vm224, %v217, %v219
  %v228 = vsel %vm224, %v215, %v217
  %v229 = vsel %vm224, %v213, %v215
  %v230 = vsel %vm224, %v223, %v213
  %231 = vst [vmem:[#allocation2 + $0x180] sm:$0xff] %v229
  %232 = vst [vmem:[#allocation2 + $0x188] sm:$0xff] %v228
  %233 = vst [vmem:[#allocation2 + $0x190] sm:$0xff] %v227
  %234 = vst [vmem:[#allocation2 + $0x198] sm:$0xff] %v226
  %235 = vst [vmem:[#allocation2 + $0x1a0] sm:$0xff] %v225
  %236 = vst [vmem:[#allocation2 + $0x1a8] sm:$0xff] %v230
  %v237 = vld [vmem:[%s1] sm:$0xf]
  %v238 = vld [vmem:[#allocation2] sm:$0xff]
  %v239 = vld [vmem:[#allocation2 + $0x8] sm:$0xff]
  %v240 = vld [vmem:[#allocation2 + $0x10] sm:$0xff]
  %v241 = vld [vmem:[#allocation2 + $0x18] sm:$0xff]
  %v242 = vld [vmem:[#allocation2 + $0x20] sm:$0xff]
  %v243 = vld [vmem:[#allocation2 + $0x28] sm:$0xff]
  %v244 = vld [vmem:[#allocation2 + $0x30] sm:$0xff]
  %v245 = vld [vmem:[#allocation2 + $0x38] sm:$0xff]
  %v246 = vld [vmem:[#allocation2 + $0x40] sm:$0xff]
  %v247 = vld [vmem:[#allocation2 + $0x48] sm:$0xff]
  %v248 = vld [vmem:[#allocation2 + $0x50] sm:$0xff]
  %v249 = vld [vmem:[#allocation2 + $0x58] sm:$0xff]
  %v250 = vld [vmem:[#allocation2 + $0x60] sm:$0xff]
  %v251 = vld [vmem:[#allocation2 + $0x68] sm:$0xff]
  %v252 = vld [vmem:[#allocation2 + $0x70] sm:$0xff]
  %v253 = vld [vmem:[#allocation2 + $0x78] sm:$0xff]
  %v254 = vld [vmem:[#allocation2 + $0x80] sm:$0xff]
  %v255 = vld [vmem:[#allocation2 + $0x88] sm:$0xff]
  %v256 = vld [vmem:[#allocation2 + $0x90] sm:$0xff]
  %v257 = vld [vmem:[#allocation2 + $0x98] sm:$0xff]
  %v258 = vld [vmem:[#allocation2 + $0xa0] sm:$0xff]
  %v259 = vld [vmem:[#allocation2 + $0xa8] sm:$0xff]
  %v260 = vld [vmem:[#allocation2 + $0xb0] sm:$0xff]
  %v261 = vld [vmem:[#allocation2 + $0xb8] sm:$0xff]
  %v262 = vld [vmem:[#allocation2 + $0xc0] sm:$0xff]
  %v263 = vld [vmem:[#allocation2 + $0xc8] sm:$0xff]
  %v264 = vld [vmem:[#allocation2 + $0xd0] sm:$0xff]
  %v265 = vld [vmem:[#allocation2 + $0xd8] sm:$0xff]
  %v266 = vld [vmem:[#allocation2 + $0xe0] sm:$0xff]
  %v267 = vld [vmem:[#allocation2 + $0xe8] sm:$0xff]
  %v268 = vld [vmem:[#allocation2 + $0xf0] sm:$0xff]
  %v269 = vld [vmem:[#allocation2 + $0xf8] sm:$0xff]
  %v270 = vld [vmem:[#allocation2 + $0x100] sm:$0xff]
  %v271 = vld [vmem:[#allocation2 + $0x108] sm:$0xff]
  %v272 = vld [vmem:[#allocation2 + $0x110] sm:$0xff]
  %v273 = vld [vmem:[#allocation2 + $0x118] sm:$0xff]
  %v274 = vld [vmem:[#allocation2 + $0x120] sm:$0xff]
  %v275 = vld [vmem:[#allocation2 + $0x128] sm:$0xff]
  %v276 = vld [vmem:[#allocation2 + $0x130] sm:$0xff]
  %v277 = vld [vmem:[#allocation2 + $0x138] sm:$0xff]
  %v278 = vld [vmem:[#allocation2 + $0x140] sm:$0xff]
  %v279 = vld [vmem:[#allocation2 + $0x148] sm:$0xff]
  %v280 = vld [vmem:[#allocation2 + $0x150] sm:$0xff]
  %v281 = vld [vmem:[#allocation2 + $0x158] sm:$0xff]
  %v282 = vld [vmem:[#allocation2 + $0x160] sm:$0xff]
  %v283 = vld [vmem:[#allocation2 + $0x168] sm:$0xff]
  %v284 = vld [vmem:[#allocation2 + $0x170] sm:$0xff]
  %v285 = vld [vmem:[#allocation2 + $0x178] sm:$0xff]
  %v286 = vld [vmem:[#allocation2 + $0x180] sm:$0xff]
  %v287 = vld [vmem:[#allocation2 + $0x188] sm:$0xff]
  %v288 = vld [vmem:[#allocation2 + $0x190] sm:$0xff]
  %v289 = vld [vmem:[#allocation2 + $0x198] sm:$0xff]
  %v290 = vld [vmem:[#allocation2 + $0x1a0] sm:$0xff]
  %v291 = vld [vmem:[#allocation2 + $0x1a8] sm:$0xff]
  %v292 = vpack.c.bf16 %v244, %v238
  %v293 = vpack.c.bf16 %v245, %v239
  %v294 = vpack.c.bf16 %v246, %v240
  %v295 = vpack.c.bf16 %v247, %v241
  %v296 = vpack.c.bf16 %v248, %v242
  %v297 = vpack.c.bf16 %v249, %v243
  %v298 = vpack.c.bf16 %v256, %v250
  %v299 = vpack.c.bf16 %v257, %v251
  %v300 = vpack.c.bf16 %v258, %v252
  %v301 = vpack.c.bf16 %v259, %v253
  %v302 = vpack.c.bf16 %v260, %v254
  %v303 = vpack.c.bf16 %v261, %v255
  %v304 = vpack.c.bf16 %v268, %v262
  %v305 = vpack.c.bf16 %v269, %v263
  %v306 = vpack.c.bf16 %v270, %v264
  %v307 = vpack.c.bf16 %v271, %v265
  %v308 = vpack.c.bf16 %v272, %v266
  %v309 = vpack.c.bf16 %v273, %v267
  %v310 = vpack.c.bf16 %v280, %v274
  %v311 = vpack.c.bf16 %v281, %v275
  %v312 = vpack.c.bf16 %v282, %v276
  %v313 = vpack.c.bf16 %v283, %v277
  %v314 = vpack.c.bf16 %v284, %v278
  %v315 = vpack.c.bf16 %v285, %v279
  %v316 = vpack.c.bf16 %v286, %v286
  %v317 = vpack.c.bf16 %v287, %v287
  %v318 = vpack.c.bf16 %v288, %v288
  %v319 = vpack.c.bf16 %v289, %v289
  %v320 = vpack.c.bf16 %v290, %v290
  %v321 = vpack.c.bf16 %v291, %v291
  %vm322 = vcmask 588800
  %v324 = vsel %vm322, %v237, 0
  %vm326 = vcmask 1043456
  %v328 = vsel %vm326, %v316, 0
  %v331 = vsel %vm326, %v317, 0
  %v334 = vsel %vm326, %v318, 0
  %v337 = vsel %vm326, %v319, 0
  %v340 = vsel %vm326, %v320, 0
  %v343 = vsel %vm326, %v321, 0
  %345 = vmatprep.subr.bf16.mxu0 0
  %346 = vmatpush1.bf16.msra.mxu0 0
  %347 = vmatprep.subr.bf16.mxu0 0
  %348 = vmatpush1.bf16.msra.mxu0 0
  %349 = vmatprep.subr.bf16.mxu0 0
  %350 = vmatpush1.bf16.msra.mxu0 0
  %351 = vmatprep.subr.bf16.mxu0 %v331
  %352 = vmatpush1.bf16.msra.mxu0 %v328
  %353 = vmatprep.subr.bf16.mxu0 %v311
  %354 = vmatpush1.bf16.msra.mxu0 %v310
  %355 = vmatprep.subr.bf16.mxu0 %v305
  %356 = vmatpush1.bf16.msra.mxu0 %v304
  %357 = vmatprep.subr.bf16.mxu0 %v299
  %358 = vmatpush1.bf16.msra.mxu0 %v298
  %359 = vmatprep.subr.bf16.mxu0 %v293
  %360 = vmatpush1.bf16.msra.mxu0 %v292
  %361 = vmatprep.subr.bf16.mxu0 0
  %362 = vmatpush2.bf16.msra.mxu0 0
  %363 = vmatprep.subr.bf16.mxu0 0
  %364 = vmatpush2.bf16.msra.mxu0 0
  %365 = vmatprep.subr.bf16.mxu0 0
  %366 = vmatpush2.bf16.msra.mxu0 0
  %367 = vmatprep.subr.bf16.mxu0 0
  %368 = vmatpush2.bf16.msra.mxu0 0
  %369 = vmatprep.subr.bf16.mxu0 0
  %370 = vmatpush2.bf16.msra.mxu0 0
  %371 = vmatprep.subr.bf16.mxu0 0
  %372 = vmatpush2.bf16.msra.mxu0 0
  %373 = vmatprep.subr.bf16.mxu0 0
  %374 = vmatpush2.bf16.msra.mxu0 0
  %375 = vmatprep.subr.bf16.mxu0 0
  %376 = vmatpush2.bf16.msra.mxu0 0
  %377 = vmatprep.mubr.bf16.mxu0 0
  %378 = vmatmul.mubr.bf16.gmra.mxu0 %v324
  %v379 = vpop.f32.mrf.mxu0
  %v380 = vadd.f32 0.0, %v379
  %v381 = vpop.f32.mrf.mxu0
  %v382 = vadd.f32 0.0, %v381
  %v383 = vpop.f32.mrf.mxu0
  %v384 = vpop.f32.mrf.mxu0
  %385 = vdwg.mxu0
  %386 = vmatprep.subr.bf16.mxu0 0
  %387 = vmatpush1.bf16.msra.mxu0 0
  %388 = vmatprep.subr.bf16.mxu0 0
  %389 = vmatpush1.bf16.msra.mxu0 0
  %390 = vmatprep.subr.bf16.mxu0 0
  %391 = vmatpush1.bf16.msra.mxu0 0
  %392 = vmatprep.subr.bf16.mxu0 %v337
  %393 = vmatpush1.bf16.msra.mxu0 %v334
  %394 = vmatprep.subr.bf16.mxu0 %v313
  %395 = vmatpush1.bf16.msra.mxu0 %v312
  %396 = vmatprep.subr.bf16.mxu0 %v307
  %397 = vmatpush1.bf16.msra.mxu0 %v306
  %398 = vmatprep.subr.bf16.mxu0 %v301
  %399 = vmatpush1.bf16.msra.mxu0 %v300
  %400 = vmatprep.subr.bf16.mxu0 %v295
  %401 = vmatpush1.bf16.msra.mxu0 %v294
  %402 = vmatprep.subr.bf16.mxu0 0
  %403 = vmatpush2.bf16.msra.mxu0 0
  %404 = vmatprep.subr.bf16.mxu0 0
  %405 = vmatpush2.bf16.msra.mxu0 0
  %406 = vmatprep.subr.bf16.mxu0 0
  %407 = vmatpush2.bf16.msra.mxu0 0
  %408 = vmatprep.subr.bf16.mxu0 0
  %409 = vmatpush2.bf16.msra.mxu0 0
  %410 = vmatprep.subr.bf16.mxu0 0
  %411 = vmatpush2.bf16.msra.mxu0 0
  %412 = vmatprep.subr.bf16.mxu0 0
  %413 = vmatpush2.bf16.msra.mxu0 0
  %414 = vmatprep.subr.bf16.mxu0 0
  %415 = vmatpush2.bf16.msra.mxu0 0
  %416 = vmatprep.subr.bf16.mxu0 0
  %417 = vmatpush2.bf16.msra.mxu0 0
  %418 = vmatprep.mubr.bf16.mxu0 0
  %419 = vmatmul.mubr.bf16.gmra.mxu0 %v324
  %v420 = vpop.f32.mrf.mxu0
  %v421 = vadd.f32 0.0, %v420
  %v422 = vpop.f32.mrf.mxu0
  %v423 = vadd.f32 0.0, %v422
  %v424 = vpop.f32.mrf.mxu0
  %v425 = vpop.f32.mrf.mxu0
  %426 = vdwg.mxu0
  %427 = vmatprep.subr.bf16.mxu0 0
  %428 = vmatpush1.bf16.msra.mxu0 0
  %429 = vmatprep.subr.bf16.mxu0 0
  %430 = vmatpush1.bf16.msra.mxu0 0
  %431 = vmatprep.subr.bf16.mxu0 0
  %432 = vmatpush1.bf16.msra.mxu0 0
  %433 = vmatprep.subr.bf16.mxu0 %v343
  %434 = vmatpush1.bf16.msra.mxu0 %v340
  %435 = vmatprep.subr.bf16.mxu0 %v315
  %436 = vmatpush1.bf16.msra.mxu0 %v314
  %437 = vmatprep.subr.bf16.mxu0 %v309
  %438 = vmatpush1.bf16.msra.mxu0 %v308
  %439 = vmatprep.subr.bf16.mxu0 %v303
  %440 = vmatpush1.bf16.msra.mxu0 %v302
  %441 = vmatprep.subr.bf16.mxu0 %v297
  %442 = vmatpush1.bf16.msra.mxu0 %v296
  %443 = vmatprep.subr.bf16.mxu0 0
  %444 = vmatpush2.bf16.msra.mxu0 0
  %445 = vmatprep.subr.bf16.mxu0 0
  %446 = vmatpush2.bf16.msra.mxu0 0
  %447 = vmatprep.subr.bf16.mxu0 0
  %448 = vmatpush2.bf16.msra.mxu0 0
  %449 = vmatprep.subr.bf16.mxu0 0
  %450 = vmatpush2.bf16.msra.mxu0 0
  %451 = vmatprep.subr.bf16.mxu0 0
  %452 = vmatpush2.bf16.msra.mxu0 0
  %453 = vmatprep.subr.bf16.mxu0 0
  %454 = vmatpush2.bf16.msra.mxu0 0
  %455 = vmatprep.subr.bf16.mxu0 0
  %456 = vmatpush2.bf16.msra.mxu0 0
  %457 = vmatprep.subr.bf16.mxu0 0
  %458 = vmatpush2.bf16.msra.mxu0 0
  %459 = vmatprep.mubr.bf16.mxu0 0
  %460 = vmatmul.mubr.bf16.gmra.mxu0 %v324
  %v461 = vpop.f32.mrf.mxu0
  %v462 = vadd.f32 0.0, %v461
  %v463 = vpop.f32.mrf.mxu0
  %v464 = vadd.f32 0.0, %v463
  %v465 = vpop.f32.mrf.mxu0
  %v466 = vpop.f32.mrf.mxu0
  %467 = vdwg.mxu0
  %v469 = vlaneseq
  %v470 = vshrl.u32 %v469, 7
  %v471 = vsub.s32 0, %v470
  %v472 = vrot.slane %v21, %v471
  %v473 = vlaneseq
  %v474 = vshrl.u32 %v473, 7
  %v475 = vsub.s32 1, %v474
  %v476 = vrot.slane %v21, %v475
  %v477 = vlaneseq
  %v478 = vshrl.u32 %v477, 7
  %v479 = vsub.s32 2, %v478
  %v480 = vrot.slane %v21, %v479
  %v481 = vlaneseq
  %v482 = vshrl.u32 %v481, 7
  %v483 = vsub.s32 3, %v482
  %v484 = vrot.slane %v21, %v483
  %v485 = vlaneseq
  %v486 = vshrl.u32 %v485, 7
  %v487 = vsub.s32 4, %v486
  %v488 = vrot.slane %v21, %v487
  %v489 = vlaneseq
  %v490 = vshrl.u32 %v489, 7
  %v491 = vsub.s32 5, %v490
  %v492 = vrot.slane %v21, %v491
  %v499 = vmul.f32 %v380, %v472
  %v500 = vmul.f32 %v382, %v476
  %v501 = vmul.f32 %v421, %v480
  %v502 = vmul.f32 %v423, %v484
  %v503 = vmul.f32 %v462, %v488
  %v504 = vmul.f32 %v464, %v492
  %v505 = vadd.f32 %v499, %v500
  %v506 = vadd.f32 %v505, %v501
  %v507 = vadd.f32 %v506, %v502
  %v508 = vadd.f32 %v507, %v503
  %v509 = vadd.f32 %v508, %v504
  %510 = vadd.xlane.f32.xlu0 %v509
  %v511 = vpop.xlane.xlu0 %510
  %v512 = vmul.f32 %v499, %v380
  %v513 = vmul.f32 %v500, %v382
  %v514 = vmul.f32 %v501, %v421
  %v515 = vmul.f32 %v502, %v423
  %v516 = vmul.f32 %v503, %v462
  %v517 = vmul.f32 %v504, %v464
  %v518 = vadd.f32 %v512, %v513
  %v519 = vadd.f32 %v518, %v514
  %v520 = vadd.f32 %v519, %v515
  %v521 = vadd.f32 %v520, %v516
  %v522 = vadd.f32 %v521, %v517
  %523 = vadd.xlane.f32.xlu0 %v522
  %v524 = vpop.xlane.xlu0 %523
  %v525 = vmul.f32 %v511, 0.001953125
  %v526 = vmul.f32 %v524, 0.001953125
  %v527 = vmul.f32 %v525, %v525
  %v528 = vsub.f32 %v526, %v527
  %v529 = vmax.f32 %v528, 0.0
  %v530 = vadd.f32 %v529, 1e-05
  %v531 = vrsqrt.pop %v530
  %v532 = vmul.f32 %v28, %v531
  %v533 = vmul.f32 %v525, %v532
  %535 = vrot.lane.b32.xlu0 %v533, 1
  %v536 = vpop.permute.xlu0 %535
  %v538 = vsub.f32 %v28, %v536
  %540 = vset.pattern.permute.xlu0 0
  %541 = vperm.xlu0 %540, %v532
  %v542 = vpop.permute.xlu0 %541
  %v544 = vmul.f32 %v380, %v542
  %v545 = vmul.f32 %v382, %v542
  %v546 = vmul.f32 %v421, %v542
  %v547 = vmul.f32 %v423, %v542
  %v548 = vmul.f32 %v462, %v542
  %v549 = vmul.f32 %v464, %v542
  %551 = vset.pattern.permute.xlu0 1
  %552 = vperm.xlu0 %551, %v538
  %v553 = vpop.permute.xlu0 %552
  %v555 = vadd.f32 %v544, %v553
  %v556 = vadd.f32 %v545, %v553
  %v557 = vadd.f32 %v546, %v553
  %v558 = vadd.f32 %v547, %v553
  %v559 = vadd.f32 %v548, %v553
  %v560 = vadd.f32 %v549, %v553
  %v561 = vmax.f32 %v555, 0.0
  %v562 = vmax.f32 %v556, 0.0
  %v563 = vmax.f32 %v557, 0.0
  %v564 = vmax.f32 %v558, 0.0
  %v565 = vmax.f32 %v559, 0.0
  %v566 = vmax.f32 %v560, 0.0
  %v567 = vmul.f32 %v561, %v472
  %v568 = vmul.f32 %v562, %v476
  %v569 = vmul.f32 %v563, %v480
  %v570 = vmul.f32 %v564, %v484
  %v571 = vmul.f32 %v565, %v488
  %v572 = vmul.f32 %v566, %v492
  %573 = vrot.lane.b32.xlu0 %v567, 19
  %v574 = vpop.permute.xlu0 %573
  %575 = vrot.lane.b32.xlu0 %v568, 19
  %v576 = vpop.permute.xlu0 %575
  %577 = vrot.lane.b32.xlu0 %v569, 19
  %v578 = vpop.permute.xlu0 %577
  %579 = vrot.lane.b32.xlu0 %v570, 19
  %v580 = vpop.permute.xlu0 %579
  %581 = vrot.lane.b32.xlu0 %v571, 19
  %v582 = vpop.permute.xlu0 %581
  %583 = vrot.lane.b32.xlu0 %v572, 19
  %v584 = vpop.permute.xlu0 %583
  %v585 = vsel %vm43, %v582, %v584
  %v586 = vsel %vm43, %v580, %v582
  %v587 = vsel %vm43, %v578, %v580
  %v588 = vsel %vm43, %v576, %v578
  %v589 = vsel %vm43, %v574, %v576
  %v590 = vsel %vm43, %v584, %v574
  %591 = vst [vmem:[#allocation2] sm:$0xff] %v590
  %592 = vst [vmem:[#allocation2 + $0x8] sm:$0xff] %v589
  %593 = vst [vmem:[#allocation2 + $0x10] sm:$0xff] %v588
  %594 = vst [vmem:[#allocation2 + $0x18] sm:$0xff] %v587
  %595 = vst [vmem:[#allocation2 + $0x20] sm:$0xff] %v586
  %596 = vst [vmem:[#allocation2 + $0x28] sm:$0xff] %v585
  %597 = vrot.lane.b32.xlu0 %v567, 18
  %v598 = vpop.permute.xlu0 %597
  %599 = vrot.lane.b32.xlu0 %v568, 18
  %v600 = vpop.permute.xlu0 %599
  %601 = vrot.lane.b32.xlu0 %v569, 18
  %v602 = vpop.permute.xlu0 %601
  %603 = vrot.lane.b32.xlu0 %v570, 18
  %v604 = vpop.permute.xlu0 %603
  %605 = vrot.lane.b32.xlu0 %v571, 18
  %v606 = vpop.permute.xlu0 %605
  %607 = vrot.lane.b32.xlu0 %v572, 18
  %v608 = vpop.permute.xlu0 %607
  %v609 = vsel %vm68, %v606, %v608
  %v610 = vsel %vm68, %v604, %v606
  %v611 = vsel %vm68, %v602, %v604
  %v612 = vsel %vm68, %v600, %v602
  %v613 = vsel %vm68, %v598, %v600
  %v614 = vsel %vm68, %v608, %v598
  %615 = vst [vmem:[#allocation2 + $0x30] sm:$0xff] %v614
  %616 = vst [vmem:[#allocation2 + $0x38] sm:$0xff] %v613
  %617 = vst [vmem:[#allocation2 + $0x40] sm:$0xff] %v612
  %618 = vst [vmem:[#allocation2 + $0x48] sm:$0xff] %v611
  %619 = vst [vmem:[#allocation2 + $0x50] sm:$0xff] %v610
  %620 = vst [vmem:[#allocation2 + $0x58] sm:$0xff] %v609
  %621 = vrot.lane.b32.xlu0 %v567, 17
  %v622 = vpop.permute.xlu0 %621
  %623 = vrot.lane.b32.xlu0 %v568, 17
  %v624 = vpop.permute.xlu0 %623
  %625 = vrot.lane.b32.xlu0 %v569, 17
  %v626 = vpop.permute.xlu0 %625
  %627 = vrot.lane.b32.xlu0 %v570, 17
  %v628 = vpop.permute.xlu0 %627
  %629 = vrot.lane.b32.xlu0 %v571, 17
  %v630 = vpop.permute.xlu0 %629
  %631 = vrot.lane.b32.xlu0 %v572, 17
  %v632 = vpop.permute.xlu0 %631
  %v633 = vsel %vm93, %v630, %v632
  %v634 = vsel %vm93, %v628, %v630
  %v635 = vsel %vm93, %v626, %v628
  %v636 = vsel %vm93, %v624, %v626
  %v637 = vsel %vm93, %v622, %v624
  %v638 = vsel %vm93, %v632, %v622
  %639 = vst [vmem:[#allocation2 + $0x60] sm:$0xff] %v638
  %640 = vst [vmem:[#allocation2 + $0x68] sm:$0xff] %v637
  %641 = vst [vmem:[#allocation2 + $0x70] sm:$0xff] %v636
  %642 = vst [vmem:[#allocation2 + $0x78] sm:$0xff] %v635
  %643 = vst [vmem:[#allocation2 + $0x80] sm:$0xff] %v634
  %644 = vst [vmem:[#allocation2 + $0x88] sm:$0xff] %v633
  %645 = vrot.lane.b32.xlu0 %v567, 1
  %v646 = vpop.permute.xlu0 %645
  %647 = vrot.lane.b32.xlu0 %v568, 1
  %v648 = vpop.permute.xlu0 %647
  %649 = vrot.lane.b32.xlu0 %v569, 1
  %v650 = vpop.permute.xlu0 %649
  %651 = vrot.lane.b32.xlu0 %v570, 1
  %v652 = vpop.permute.xlu0 %651
  %653 = vrot.lane.b32.xlu0 %v571, 1
  %v654 = vpop.permute.xlu0 %653
  %655 = vrot.lane.b32.xlu0 %v572, 1
  %v656 = vpop.permute.xlu0 %655
  %v657 = vsel %vm118, %v654, %v656
  %v658 = vsel %vm118, %v652, %v654
  %v659 = vsel %vm118, %v650, %v652
  %v660 = vsel %vm118, %v648, %v650
  %v661 = vsel %vm118, %v646, %v648
  %v662 = vsel %vm118, %v656, %v646
  %663 = vst [vmem:[#allocation2 + $0x90] sm:$0xff] %v662
  %664 = vst [vmem:[#allocation2 + $0x98] sm:$0xff] %v661
  %665 = vst [vmem:[#allocation2 + $0xa0] sm:$0xff] %v660
  %666 = vst [vmem:[#allocation2 + $0xa8] sm:$0xff] %v659
  %667 = vst [vmem:[#allocation2 + $0xb0] sm:$0xff] %v658
  %668 = vst [vmem:[#allocation2 + $0xb8] sm:$0xff] %v657
  %669 = vst [vmem:[#allocation2 + $0xc0] sm:$0xff] %v567
  %670 = vst [vmem:[#allocation2 + $0xc8] sm:$0xff] %v568
  %671 = vst [vmem:[#allocation2 + $0xd0] sm:$0xff] %v569
  %672 = vst [vmem:[#allocation2 + $0xd8] sm:$0xff] %v570
  %673 = vst [vmem:[#allocation2 + $0xe0] sm:$0xff] %v571
  %674 = vst [vmem:[#allocation2 + $0xe8] sm:$0xff] %v572
  %675 = vrot.lane.b32.xlu0 %v567, 127
  %v676 = vpop.permute.xlu0 %675
  %677 = vrot.lane.b32.xlu0 %v568, 127
  %v678 = vpop.permute.xlu0 %677
  %679 = vrot.lane.b32.xlu0 %v569, 127
  %v680 = vpop.permute.xlu0 %679
  %681 = vrot.lane.b32.xlu0 %v570, 127
  %v682 = vpop.permute.xlu0 %681
  %683 = vrot.lane.b32.xlu0 %v571, 127
  %v684 = vpop.permute.xlu0 %683
  %685 = vrot.lane.b32.xlu0 %v572, 127
  %v686 = vpop.permute.xlu0 %685
  %v687 = vsel %vm149, %v684, %v686
  %v688 = vsel %vm149, %v682, %v684
  %v689 = vsel %vm149, %v680, %v682
  %v690 = vsel %vm149, %v678, %v680
  %v691 = vsel %vm149, %v676, %v678
  %v692 = vsel %vm149, %v686, %v676
  %693 = vst [vmem:[#allocation2 + $0xf0] sm:$0xff] %v691
  %694 = vst [vmem:[#allocation2 + $0xf8] sm:$0xff] %v690
  %695 = vst [vmem:[#allocation2 + $0x100] sm:$0xff] %v689
  %696 = vst [vmem:[#allocation2 + $0x108] sm:$0xff] %v688
  %697 = vst [vmem:[#allocation2 + $0x110] sm:$0xff] %v687
  %698 = vst [vmem:[#allocation2 + $0x118] sm:$0xff] %v692
  %699 = vrot.lane.b32.xlu0 %v567, 111
  %v700 = vpop.permute.xlu0 %699
  %701 = vrot.lane.b32.xlu0 %v568, 111
  %v702 = vpop.permute.xlu0 %701
  %703 = vrot.lane.b32.xlu0 %v569, 111
  %v704 = vpop.permute.xlu0 %703
  %705 = vrot.lane.b32.xlu0 %v570, 111
  %v706 = vpop.permute.xlu0 %705
  %707 = vrot.lane.b32.xlu0 %v571, 111
  %v708 = vpop.permute.xlu0 %707
  %709 = vrot.lane.b32.xlu0 %v572, 111
  %v710 = vpop.permute.xlu0 %709
  %v711 = vsel %vm174, %v708, %v710
  %v712 = vsel %vm174, %v706, %v708
  %v713 = vsel %vm174, %v704, %v706
  %v714 = vsel %vm174, %v702, %v704
  %v715 = vsel %vm174, %v700, %v702
  %v716 = vsel %vm174, %v710, %v700
  %717 = vst [vmem:[#allocation2 + $0x120] sm:$0xff] %v715
  %718 = vst [vmem:[#allocation2 + $0x128] sm:$0xff] %v714
  %719 = vst [vmem:[#allocation2 + $0x130] sm:$0xff] %v713
  %720 = vst [vmem:[#allocation2 + $0x138] sm:$0xff] %v712
  %721 = vst [vmem:[#allocation2 + $0x140] sm:$0xff] %v711
  %722 = vst [vmem:[#allocation2 + $0x148] sm:$0xff] %v716
  %723 = vrot.lane.b32.xlu0 %v567, 110
  %v724 = vpop.permute.xlu0 %723
  %725 = vrot.lane.b32.xlu0 %v568, 110
  %v726 = vpop.permute.xlu0 %725
  %727 = vrot.lane.b32.xlu0 %v569, 110
  %v728 = vpop.permute.xlu0 %727
  %729 = vrot.lane.b32.xlu0 %v570, 110
  %v730 = vpop.permute.xlu0 %729
  %731 = vrot.lane.b32.xlu0 %v571, 110
  %v732 = vpop.permute.xlu0 %731
  %733 = vrot.lane.b32.xlu0 %v572, 110
  %v734 = vpop.permute.xlu0 %733
  %v735 = vsel %vm199, %v732, %v734
  %v736 = vsel %vm199, %v730, %v732
  %v737 = vsel %vm199, %v728, %v730
  %v738 = vsel %vm199, %v726, %v728
  %v739 = vsel %vm199, %v724, %v726
  %v740 = vsel %vm199, %v734, %v724
  %741 = vst [vmem:[#allocation2 + $0x150] sm:$0xff] %v739
  %742 = vst [vmem:[#allocation2 + $0x158] sm:$0xff] %v738
  %743 = vst [vmem:[#allocation2 + $0x160] sm:$0xff] %v737
  %744 = vst [vmem:[#allocation2 + $0x168] sm:$0xff] %v736
  %745 = vst [vmem:[#allocation2 + $0x170] sm:$0xff] %v735
  %746 = vst [vmem:[#allocation2 + $0x178] sm:$0xff] %v740
  %747 = vrot.lane.b32.xlu0 %v567, 109
  %v748 = vpop.permute.xlu0 %747
  %749 = vrot.lane.b32.xlu0 %v568, 109
  %v750 = vpop.permute.xlu0 %749
  %751 = vrot.lane.b32.xlu0 %v569, 109
  %v752 = vpop.permute.xlu0 %751
  %753 = vrot.lane.b32.xlu0 %v570, 109
  %v754 = vpop.permute.xlu0 %753
  %755 = vrot.lane.b32.xlu0 %v571, 109
  %v756 = vpop.permute.xlu0 %755
  %757 = vrot.lane.b32.xlu0 %v572, 109
  %v758 = vpop.permute.xlu0 %757
  %v759 = vsel %vm224, %v756, %v758
  %v760 = vsel %vm224, %v754, %v756
  %v761 = vsel %vm224, %v752, %v754
  %v762 = vsel %vm224, %v750, %v752
  %v763 = vsel %vm224, %v748, %v750
  %v764 = vsel %vm224, %v758, %v748
  %765 = vst [vmem:[#allocation2 + $0x180] sm:$0xff] %v763
  %766 = vst [vmem:[#allocation2 + $0x188] sm:$0xff] %v762
  %767 = vst [vmem:[#allocation2 + $0x190] sm:$0xff] %v761
  %768 = vst [vmem:[#allocation2 + $0x198] sm:$0xff] %v760
  %769 = vst [vmem:[#allocation2 + $0x1a0] sm:$0xff] %v759
  %770 = vst [vmem:[#allocation2 + $0x1a8] sm:$0xff] %v764
  %v771 = vld [vmem:[%s2] sm:$0xf]
  %v772 = vld [vmem:[#allocation2] sm:$0xff]
  %v773 = vld [vmem:[#allocation2 + $0x8] sm:$0xff]
  %v774 = vld [vmem:[#allocation2 + $0x10] sm:$0xff]
  %v775 = vld [vmem:[#allocation2 + $0x18] sm:$0xff]
  %v776 = vld [vmem:[#allocation2 + $0x20] sm:$0xff]
  %v777 = vld [vmem:[#allocation2 + $0x28] sm:$0xff]
  %v778 = vld [vmem:[#allocation2 + $0x30] sm:$0xff]
  %v779 = vld [vmem:[#allocation2 + $0x38] sm:$0xff]
  %v780 = vld [vmem:[#allocation2 + $0x40] sm:$0xff]
  %v781 = vld [vmem:[#allocation2 + $0x48] sm:$0xff]
  %v782 = vld [vmem:[#allocation2 + $0x50] sm:$0xff]
  %v783 = vld [vmem:[#allocation2 + $0x58] sm:$0xff]
  %v784 = vld [vmem:[#allocation2 + $0x60] sm:$0xff]
  %v785 = vld [vmem:[#allocation2 + $0x68] sm:$0xff]
  %v786 = vld [vmem:[#allocation2 + $0x70] sm:$0xff]
  %v787 = vld [vmem:[#allocation2 + $0x78] sm:$0xff]
  %v788 = vld [vmem:[#allocation2 + $0x80] sm:$0xff]
  %v789 = vld [vmem:[#allocation2 + $0x88] sm:$0xff]
  %v790 = vld [vmem:[#allocation2 + $0x90] sm:$0xff]
  %v791 = vld [vmem:[#allocation2 + $0x98] sm:$0xff]
  %v792 = vld [vmem:[#allocation2 + $0xa0] sm:$0xff]
  %v793 = vld [vmem:[#allocation2 + $0xa8] sm:$0xff]
  %v794 = vld [vmem:[#allocation2 + $0xb0] sm:$0xff]
  %v795 = vld [vmem:[#allocation2 + $0xb8] sm:$0xff]
  %v796 = vld [vmem:[#allocation2 + $0xc0] sm:$0xff]
  %v797 = vld [vmem:[#allocation2 + $0xc8] sm:$0xff]
  %v798 = vld [vmem:[#allocation2 + $0xd0] sm:$0xff]
  %v799 = vld [vmem:[#allocation2 + $0xd8] sm:$0xff]
  %v800 = vld [vmem:[#allocation2 + $0xe0] sm:$0xff]
  %v801 = vld [vmem:[#allocation2 + $0xe8] sm:$0xff]
  %v802 = vld [vmem:[#allocation2 + $0xf0] sm:$0xff]
  %v803 = vld [vmem:[#allocation2 + $0xf8] sm:$0xff]
  %v804 = vld [vmem:[#allocation2 + $0x100] sm:$0xff]
  %v805 = vld [vmem:[#allocation2 + $0x108] sm:$0xff]
  %v806 = vld [vmem:[#allocation2 + $0x110] sm:$0xff]
  %v807 = vld [vmem:[#allocation2 + $0x118] sm:$0xff]
  %v808 = vld [vmem:[#allocation2 + $0x120] sm:$0xff]
  %v809 = vld [vmem:[#allocation2 + $0x128] sm:$0xff]
  %v810 = vld [vmem:[#allocation2 + $0x130] sm:$0xff]
  %v811 = vld [vmem:[#allocation2 + $0x138] sm:$0xff]
  %v812 = vld [vmem:[#allocation2 + $0x140] sm:$0xff]
  %v813 = vld [vmem:[#allocation2 + $0x148] sm:$0xff]
  %v814 = vld [vmem:[#allocation2 + $0x150] sm:$0xff]
  %v815 = vld [vmem:[#allocation2 + $0x158] sm:$0xff]
  %v816 = vld [vmem:[#allocation2 + $0x160] sm:$0xff]
  %v817 = vld [vmem:[#allocation2 + $0x168] sm:$0xff]
  %v818 = vld [vmem:[#allocation2 + $0x170] sm:$0xff]
  %v819 = vld [vmem:[#allocation2 + $0x178] sm:$0xff]
  %v820 = vld [vmem:[#allocation2 + $0x180] sm:$0xff]
  %v821 = vld [vmem:[#allocation2 + $0x188] sm:$0xff]
  %v822 = vld [vmem:[#allocation2 + $0x190] sm:$0xff]
  %v823 = vld [vmem:[#allocation2 + $0x198] sm:$0xff]
  %v824 = vld [vmem:[#allocation2 + $0x1a0] sm:$0xff]
  %v825 = vld [vmem:[#allocation2 + $0x1a8] sm:$0xff]
  %v826 = vpack.c.bf16 %v778, %v772
  %v827 = vpack.c.bf16 %v779, %v773
  %v828 = vpack.c.bf16 %v780, %v774
  %v829 = vpack.c.bf16 %v781, %v775
  %v830 = vpack.c.bf16 %v782, %v776
  %v831 = vpack.c.bf16 %v783, %v777
  %v832 = vpack.c.bf16 %v790, %v784
  %v833 = vpack.c.bf16 %v791, %v785
  %v834 = vpack.c.bf16 %v792, %v786
  %v835 = vpack.c.bf16 %v793, %v787
  %v836 = vpack.c.bf16 %v794, %v788
  %v837 = vpack.c.bf16 %v795, %v789
  %v838 = vpack.c.bf16 %v802, %v796
  %v839 = vpack.c.bf16 %v803, %v797
  %v840 = vpack.c.bf16 %v804, %v798
  %v841 = vpack.c.bf16 %v805, %v799
  %v842 = vpack.c.bf16 %v806, %v800
  %v843 = vpack.c.bf16 %v807, %v801
  %v844 = vpack.c.bf16 %v814, %v808
  %v845 = vpack.c.bf16 %v815, %v809
  %v846 = vpack.c.bf16 %v816, %v810
  %v847 = vpack.c.bf16 %v817, %v811
  %v848 = vpack.c.bf16 %v818, %v812
  %v849 = vpack.c.bf16 %v819, %v813
  %v850 = vpack.c.bf16 %v820, %v820
  %v851 = vpack.c.bf16 %v821, %v821
  %v852 = vpack.c.bf16 %v822, %v822
  %v853 = vpack.c.bf16 %v823, %v823
  %v854 = vpack.c.bf16 %v824, %v824
  %v855 = vpack.c.bf16 %v825, %v825
  %v857 = vsel %vm322, %v771, 0
  %v860 = vsel %vm326, %v850, 0
  %v863 = vsel %vm326, %v851, 0
  %v866 = vsel %vm326, %v852, 0
  %v869 = vsel %vm326, %v853, 0
  %v872 = vsel %vm326, %v854, 0
  %v875 = vsel %vm326, %v855, 0
  %877 = vmatprep.subr.bf16.mxu0 0
  %878 = vmatpush1.bf16.msra.mxu0 0
  %879 = vmatprep.subr.bf16.mxu0 0
  %880 = vmatpush1.bf16.msra.mxu0 0
  %881 = vmatprep.subr.bf16.mxu0 0
  %882 = vmatpush1.bf16.msra.mxu0 0
  %883 = vmatprep.subr.bf16.mxu0 %v863
  %884 = vmatpush1.bf16.msra.mxu0 %v860
  %885 = vmatprep.subr.bf16.mxu0 %v845
  %886 = vmatpush1.bf16.msra.mxu0 %v844
  %887 = vmatprep.subr.bf16.mxu0 %v839
  %888 = vmatpush1.bf16.msra.mxu0 %v838
  %889 = vmatprep.subr.bf16.mxu0 %v833
  %890 = vmatpush1.bf16.msra.mxu0 %v832
  %891 = vmatprep.subr.bf16.mxu0 %v827
  %892 = vmatpush1.bf16.msra.mxu0 %v826
  %893 = vmatprep.subr.bf16.mxu0 0
  %894 = vmatpush2.bf16.msra.mxu0 0
  %895 = vmatprep.subr.bf16.mxu0 0
  %896 = vmatpush2.bf16.msra.mxu0 0
  %897 = vmatprep.subr.bf16.mxu0 0
  %898 = vmatpush2.bf16.msra.mxu0 0
  %899 = vmatprep.subr.bf16.mxu0 0
  %900 = vmatpush2.bf16.msra.mxu0 0
  %901 = vmatprep.subr.bf16.mxu0 0
  %902 = vmatpush2.bf16.msra.mxu0 0
  %903 = vmatprep.subr.bf16.mxu0 0
  %904 = vmatpush2.bf16.msra.mxu0 0
  %905 = vmatprep.subr.bf16.mxu0 0
  %906 = vmatpush2.bf16.msra.mxu0 0
  %907 = vmatprep.subr.bf16.mxu0 0
  %908 = vmatpush2.bf16.msra.mxu0 0
  %909 = vmatprep.mubr.bf16.mxu0 0
  %910 = vmatmul.mubr.bf16.gmra.mxu0 %v857
  %v911 = vpop.f32.mrf.mxu0
  %v912 = vadd.f32 0.0, %v911
  %v913 = vpop.f32.mrf.mxu0
  %v914 = vadd.f32 0.0, %v913
  %v915 = vpop.f32.mrf.mxu0
  %v916 = vpop.f32.mrf.mxu0
  %917 = vdwg.mxu0
  %918 = vmatprep.subr.bf16.mxu0 0
  %919 = vmatpush1.bf16.msra.mxu0 0
  %920 = vmatprep.subr.bf16.mxu0 0
  %921 = vmatpush1.bf16.msra.mxu0 0
  %922 = vmatprep.subr.bf16.mxu0 0
  %923 = vmatpush1.bf16.msra.mxu0 0
  %924 = vmatprep.subr.bf16.mxu0 %v869
  %925 = vmatpush1.bf16.msra.mxu0 %v866
  %926 = vmatprep.subr.bf16.mxu0 %v847
  %927 = vmatpush1.bf16.msra.mxu0 %v846
  %928 = vmatprep.subr.bf16.mxu0 %v841
  %929 = vmatpush1.bf16.msra.mxu0 %v840
  %930 = vmatprep.subr.bf16.mxu0 %v835
  %931 = vmatpush1.bf16.msra.mxu0 %v834
  %932 = vmatprep.subr.bf16.mxu0 %v829
  %933 = vmatpush1.bf16.msra.mxu0 %v828
  %934 = vmatprep.subr.bf16.mxu0 0
  %935 = vmatpush2.bf16.msra.mxu0 0
  %936 = vmatprep.subr.bf16.mxu0 0
  %937 = vmatpush2.bf16.msra.mxu0 0
  %938 = vmatprep.subr.bf16.mxu0 0
  %939 = vmatpush2.bf16.msra.mxu0 0
  %940 = vmatprep.subr.bf16.mxu0 0
  %941 = vmatpush2.bf16.msra.mxu0 0
  %942 = vmatprep.subr.bf16.mxu0 0
  %943 = vmatpush2.bf16.msra.mxu0 0
  %944 = vmatprep.subr.bf16.mxu0 0
  %945 = vmatpush2.bf16.msra.mxu0 0
  %946 = vmatprep.subr.bf16.mxu0 0
  %947 = vmatpush2.bf16.msra.mxu0 0
  %948 = vmatprep.subr.bf16.mxu0 0
  %949 = vmatpush2.bf16.msra.mxu0 0
  %950 = vmatprep.mubr.bf16.mxu0 0
  %951 = vmatmul.mubr.bf16.gmra.mxu0 %v857
  %v952 = vpop.f32.mrf.mxu0
  %v953 = vadd.f32 0.0, %v952
  %v954 = vpop.f32.mrf.mxu0
  %v955 = vadd.f32 0.0, %v954
  %v956 = vpop.f32.mrf.mxu0
  %v957 = vpop.f32.mrf.mxu0
  %958 = vdwg.mxu0
  %959 = vmatprep.subr.bf16.mxu0 0
  %960 = vmatpush1.bf16.msra.mxu0 0
  %961 = vmatprep.subr.bf16.mxu0 0
  %962 = vmatpush1.bf16.msra.mxu0 0
  %963 = vmatprep.subr.bf16.mxu0 0
  %964 = vmatpush1.bf16.msra.mxu0 0
  %965 = vmatprep.subr.bf16.mxu0 %v875
  %966 = vmatpush1.bf16.msra.mxu0 %v872
  %967 = vmatprep.subr.bf16.mxu0 %v849
  %968 = vmatpush1.bf16.msra.mxu0 %v848
  %969 = vmatprep.subr.bf16.mxu0 %v843
  %970 = vmatpush1.bf16.msra.mxu0 %v842
  %971 = vmatprep.subr.bf16.mxu0 %v837
  %972 = vmatpush1.bf16.msra.mxu0 %v836
  %973 = vmatprep.subr.bf16.mxu0 %v831
  %974 = vmatpush1.bf16.msra.mxu0 %v830
  %975 = vmatprep.subr.bf16.mxu0 0
  %976 = vmatpush2.bf16.msra.mxu0 0
  %977 = vmatprep.subr.bf16.mxu0 0
  %978 = vmatpush2.bf16.msra.mxu0 0
  %979 = vmatprep.subr.bf16.mxu0 0
  %980 = vmatpush2.bf16.msra.mxu0 0
  %981 = vmatprep.subr.bf16.mxu0 0
  %982 = vmatpush2.bf16.msra.mxu0 0
  %983 = vmatprep.subr.bf16.mxu0 0
  %984 = vmatpush2.bf16.msra.mxu0 0
  %985 = vmatprep.subr.bf16.mxu0 0
  %986 = vmatpush2.bf16.msra.mxu0 0
  %987 = vmatprep.subr.bf16.mxu0 0
  %988 = vmatpush2.bf16.msra.mxu0 0
  %989 = vmatprep.subr.bf16.mxu0 0
  %990 = vmatpush2.bf16.msra.mxu0 0
  %991 = vmatprep.mubr.bf16.mxu0 0
  %992 = vmatmul.mubr.bf16.gmra.mxu0 %v857
  %v993 = vpop.f32.mrf.mxu0
  %v994 = vadd.f32 0.0, %v993
  %v995 = vpop.f32.mrf.mxu0
  %v996 = vadd.f32 0.0, %v995
  %v997 = vpop.f32.mrf.mxu0
  %v998 = vpop.f32.mrf.mxu0
  %999 = vdwg.mxu0
  %v1000 = vmul.f32 %v912, %v472
  %v1001 = vmul.f32 %v914, %v476
  %v1002 = vmul.f32 %v953, %v480
  %v1003 = vmul.f32 %v955, %v484
  %v1004 = vmul.f32 %v994, %v488
  %v1005 = vmul.f32 %v996, %v492
  %v1006 = vadd.f32 %v1000, %v1001
  %v1007 = vadd.f32 %v1006, %v1002
  %v1008 = vadd.f32 %v1007, %v1003
  %v1009 = vadd.f32 %v1008, %v1004
  %v1010 = vadd.f32 %v1009, %v1005
  %1011 = vadd.xlane.f32.xlu0 %v1010
  %v1012 = vpop.xlane.xlu0 %1011
  %v1013 = vmul.f32 %v1000, %v912
  %v1014 = vmul.f32 %v1001, %v914
  %v1015 = vmul.f32 %v1002, %v953
  %v1016 = vmul.f32 %v1003, %v955
  %v1017 = vmul.f32 %v1004, %v994
  %v1018 = vmul.f32 %v1005, %v996
  %v1019 = vadd.f32 %v1013, %v1014
  %v1020 = vadd.f32 %v1019, %v1015
  %v1021 = vadd.f32 %v1020, %v1016
  %v1022 = vadd.f32 %v1021, %v1017
  %v1023 = vadd.f32 %v1022, %v1018
  %1024 = vadd.xlane.f32.xlu0 %v1023
  %v1025 = vpop.xlane.xlu0 %1024
  %v1026 = vmul.f32 %v1012, 0.001953125
  %v1027 = vmul.f32 %v1025, 0.001953125
  %v1028 = vmul.f32 %v1026, %v1026
  %v1029 = vsub.f32 %v1027, %v1028
  %v1030 = vmax.f32 %v1029, 0.0
  %v1031 = vadd.f32 %v1030, 1e-05
  %v1032 = vrsqrt.pop %v1031
  %v1033 = vmul.f32 %v28, %v1032
  %v1034 = vmul.f32 %v1026, %v1033
  %1036 = vrot.lane.b32.xlu0 %v1034, 1
  %v1037 = vpop.permute.xlu0 %1036
  %v1039 = vsub.f32 %v28, %v1037
  %1041 = vset.pattern.permute.xlu0 2
  %1042 = vperm.xlu0 %1041, %v1033
  %v1043 = vpop.permute.xlu0 %1042
  %v1045 = vmul.f32 %v912, %v1043
  %v1046 = vmul.f32 %v914, %v1043
  %v1047 = vmul.f32 %v953, %v1043
  %v1048 = vmul.f32 %v955, %v1043
  %v1049 = vmul.f32 %v994, %v1043
  %v1050 = vmul.f32 %v996, %v1043
  %1052 = vset.pattern.permute.xlu0 3
  %1053 = vperm.xlu0 %1052, %v1039
  %v1054 = vpop.permute.xlu0 %1053
  %v1056 = vadd.f32 %v1045, %v1054
  %v1057 = vadd.f32 %v1046, %v1054
  %v1058 = vadd.f32 %v1047, %v1054
  %v1059 = vadd.f32 %v1048, %v1054
  %v1060 = vadd.f32 %v1049, %v1054
  %v1061 = vadd.f32 %v1050, %v1054
  %v1062 = vadd.f32 %v1056, %v22
  %v1063 = vadd.f32 %v1057, %v23
  %v1064 = vadd.f32 %v1058, %v24
  %v1065 = vadd.f32 %v1059, %v25
  %v1066 = vadd.f32 %v1060, %v26
  %v1067 = vadd.f32 %v1061, %v27
  %v1068 = vmax.f32 %v1062, 0.0
  %v1069 = vmax.f32 %v1063, 0.0
  %v1070 = vmax.f32 %v1064, 0.0
  %v1071 = vmax.f32 %v1065, 0.0
  %v1072 = vmax.f32 %v1066, 0.0
  %v1073 = vmax.f32 %v1067, 0.0
  %1074 = vst [vmem:[%s5] sm:$0xff] %v1068
  %1075 = vst [vmem:[%s5 + $0x8] sm:$0xff] %v1069
  %1076 = vst [vmem:[%s5 + $0x10] sm:$0xff] %v1070
  %1077 = vst [vmem:[%s5 + $0x18] sm:$0xff] %v1071
  %1078 = vst [vmem:[%s5 + $0x20] sm:$0xff] %v1072
  %1079 = vst [vmem:[%s5 + $0x28] sm:$0xff] %v1073
  // Predicated region
  $region22: #{residual_block.1} parent=0 // pred_check
    _
  $region23: #{residual_block.1} parent=0 // pred_check_branch
    %1081 = sbr.rel (0) target = $region25
  $region24: #{residual_block.1} parent=0 // pred_region
    _
  $region25: #{residual_block.1} parent=0 // pred_fallthru
    _
  // Predicated region
  $region26: #{residual_block.1} parent=0 // pred_check
    _
  $region27: #{residual_block.1} parent=0 // pred_check_branch
    %1083 = sbr.rel (0) target = $region29
  $region28: #{residual_block.1} parent=0 // pred_region
    _
  $region29: #{residual_block.1} parent=0 // pred_fallthru
    _

</llo_original>
